<compile_context>
chip_gen: v5e
topology: v5e:2x2
jax: 0.10.0
libtpu: 0.0.40
codegen_flags: <defaults>
</compile_context>

<pallas_src>
import jax
import jax.numpy as jnp
from jax.experimental import pallas as pl
from jax.experimental.pallas import tpu as pltpu

LN_EPS = 1e-5     # PyTorch nn.LayerNorm default
LANE = 128        # TPU lane width
SUBLANE = 16      # bf16-safe sublane granularity for batch tiles


def _round_up(n, m):
    return (n + m - 1) // m * m


def _tpu_target():
    """Best-effort generation detection for tiling hints; conservative fallback."""
    kind = ""
    try:
        kind = (jax.devices()[0].device_kind or "").lower()
    except Exception:
        pass
    mib = 1024 * 1024
    if ("v7" in kind) or ("tpu7" in kind) or ("7x" in kind):
        # v7x: 2 TensorCores/chip, 64 MiB physical VMEM per TC.
        return dict(n_tc=2, vmem_cap=48 * mib)
    if "v6" in kind:
        return dict(n_tc=1, vmem_cap=96 * mib)
    if ("v5 lite" in kind) or ("v5e" in kind):
        # v5e: default scoped VMEM is only 16 MiB -> raise it.
        return dict(n_tc=1, vmem_cap=96 * mib)
    if ("v5" in kind) or ("v4" in kind):
        # v5p / v4 megacore.
        return dict(n_tc=2, vmem_cap=64 * mib)
    # Unknown (incl. older chips with small VMEM): don't touch the limit.
    return dict(n_tc=1, vmem_cap=None)


def _layernorm(h, gamma, beta):
    mu = jnp.mean(h, axis=-1, keepdims=True)
    d = h - mu
    var = jnp.mean(d * d, axis=-1, keepdims=True)
    return d * jax.lax.rsqrt(var + LN_EPS) * gamma + beta


def _mlp_grouped_probs(x_ref, w1_ref, b1_ref, g1_ref, be1_ref,
                       w2_ref, b2_ref, g2_ref, be2_ref, w3_ref, b3_ref):
    """fc1->relu->ln1->fc2->relu->ln2->fc3 + grouped softmax (action-major)."""
    mm = w1_ref.dtype  # bf16 (or f32) matmul operand dtype

    # fc1 -> relu -> ln1  (x cast to bf16 in VMEM; f32 MXU accumulation)
    h = jnp.dot(x_ref[...].astype(mm), w1_ref[...],
                preferred_element_type=jnp.float32)
    h = jnp.maximum(h + b1_ref[...], 0.0)
    h = _layernorm(h, g1_ref[...], be1_ref[...])
    # dropout (eval) == identity

    # fc2 -> relu -> ln2
    h = jnp.dot(h.astype(mm), w2_ref[...], preferred_element_type=jnp.float32)
    h = jnp.maximum(h + b2_ref[...], 0.0)
    h = _layernorm(h, g2_ref[...], be2_ref[...])
    # dropout (eval) == identity

    # fc3 with action-major, lane-padded columns:
    #   [ action0 for all stocks | action1 | action2 ]
    logits = jnp.dot(h.astype(mm), w3_ref[...],
                     preferred_element_type=jnp.float32) + b3_ref[...]

    nsp = logits.shape[-1] // 3            # static, multiple of 128
    l0 = logits[:, 0 * nsp:1 * nsp]
    l1 = logits[:, 1 * nsp:2 * nsp]
    l2 = logits[:, 2 * nsp:3 * nsp]

    # grouped softmax with a true per-group max (robust) + exact divide
    m = jnp.maximum(jnp.maximum(l0, l1), l2)
    e0 = jnp.exp(l0 - m)
    e1 = jnp.exp(l1 - m)
    e2 = jnp.exp(l2 - m)
    r = 1.0 / (e0 + e1 + e2)
    return e0 * r, e1 * r, e2 * r


def drl_trader_kernel_interleaved(x_ref,
                                  w1_ref, b1_ref, g1_ref, be1_ref,
                                  w2_ref, b2_ref, g2_ref, be2_ref,
                                  w3_ref, b3_ref, perm_ref,
                                  o_ref):
    """Small-universe path: interleave probs back to PyTorch column order via a
    tiny f32 0/1 permutation matmul and store one lane-dense output block."""
    p0, p1, p2 = _mlp_grouped_probs(x_ref, w1_ref, b1_ref, g1_ref, be1_ref,
                                    w2_ref, b2_ref, g2_ref, be2_ref,
                                    w3_ref, b3_ref)
    nsp = p0.shape[-1]
    perm = perm_ref[...]                   # (3*nsp, out_w), f32 0/1
    out = jnp.dot(p0, perm[0 * nsp:1 * nsp, :], preferred_element_type=jnp.float32)
    out = out + jnp.dot(p1, perm[1 * nsp:2 * nsp, :], preferred_element_type=jnp.float32)
    out = out + jnp.dot(p2, perm[2 * nsp:3 * nsp, :], preferred_element_type=jnp.float32)
    o_ref[...] = out.astype(o_ref.dtype)


def drl_trader_kernel_actionmajor(x_ref,
                                  w1_ref, b1_ref, g1_ref, be1_ref,
                                  w2_ref, b2_ref, g2_ref, be2_ref,
                                  w3_ref, b3_ref,
                                  o_ref):
    """Large-universe fallback: lane-aligned action-major stores (wrapper unpacks)."""
    p0, p1, p2 = _mlp_grouped_probs(x_ref, w1_ref, b1_ref, g1_ref, be1_ref,
                                    w2_ref, b2_ref, g2_ref, be2_ref,
                                    w3_ref, b3_ref)
    nsp = p0.shape[-1]
    o_ref[:, 0 * nsp:1 * nsp] = p0.astype(o_ref.dtype)
    o_ref[:, 1 * nsp:2 * nsp] = p1.astype(o_ref.dtype)
    o_ref[:, 2 * nsp:3 * nsp] = p2.astype(o_ref.dtype)


def prepare_params(params, n_stocks, *, use_bf16=True):
    """One-time host-side packing of PyTorch-layout params into kernel layout."""
    mm = jnp.bfloat16 if use_bf16 else jnp.float32
    nsp = _round_up(n_stocks, LANE)
    out_w = _round_up(3 * n_stocks, LANE)
    interleave = (3 * n_stocks) <= 512     # small universe: in-kernel interleave

    def pack(a):
        # (rows, n_stocks*3) -> (rows, 3*nsp): de-interleave actions, pad lanes
        rows = a.shape[0]
        out = jnp.zeros((rows, 3 * nsp), a.dtype)
        for act in range(3):
            out = out.at[:, act * nsp: act * nsp + n_stocks].set(a[:, act::3])
        return out

    prep = dict(
        n_stocks=n_stocks, nsp=nsp, out_w=out_w,
        interleave=interleave, mm_dtype=mm,
        w1=params["w1"].astype(mm), b1=params["b1"],
        g1=params["g1"], be1=params["be1"],
        w2=params["w2"].astype(mm), b2=params["b2"],
        g2=params["g2"], be2=params["be2"],
        w3=pack(params["w3"]).astype(mm), b3=pack(params["b3"]),
    )
    if interleave:
        # f32 0/1 permutation: action-major column (a*nsp + s) -> interleaved (3s + a)
        acts = jnp.arange(3)
        stocks = jnp.arange(n_stocks)
        rows = (acts[:, None] * nsp + stocks[None, :]).reshape(-1)
        cols = (3 * stocks[None, :] + acts[:, None]).reshape(-1)
        prep["perm"] = jnp.zeros((3 * nsp, out_w), jnp.float32).at[rows, cols].set(1.0)
    return prep


def drl_trader_forward(x, prep, *, batch_tile=512, out_dtype=jnp.float32):
    """x: [B, state_dim] f32 -> [B, n_stocks*3] (PyTorch column order)."""
    B, D = x.shape
    n_stocks, nsp = prep["n_stocks"], prep["nsp"]
    interleave = prep["interleave"]
    out_w = prep["out_w"] if interleave else 3 * nsp
    out_bytes = jnp.dtype(out_dtype).itemsize

    weight_names = ["w1", "b1", "g1", "be1", "w2", "b2", "g2", "be2", "w3", "b3"]
    if interleave:
        weight_names.append("perm")
    weight_args = [prep[k] for k in weight_names]
    w_bytes = sum(int(a.size) * a.dtype.itemsize for a in weight_args)

    tgt = _tpu_target()
    n_tc = tgt["n_tc"]
    vmem_budget = tgt["vmem_cap"] or (32 * 1024 * 1024)

    # --- batch tiling --------------------------------------------------------
    # Minimal number of slabs: >= n_tc (so a v7x chip uses both TensorCores)
    # and enough that each slab is <= batch_tile.  On 1-TC chips this yields
    # the single largest slab (grid steps are a serial loop there).
    if B >= n_tc * SUBLANE:
        n_steps = max(n_tc, pl.cdiv(B, batch_tile))
    else:
        n_steps = 1
    bt = min(batch_tile, _round_up(pl.cdiv(B, n_steps), SUBLANE))

    # VMEM-budget clamp on the slab (matters on v7x: 64 MiB physical per TC).
    row_bytes = (2 * D * 4                       # x slab (f32, double-buffered)
                 + 2 * out_w * out_bytes         # output slab (double-buffered)
                 + (256 + 128 + 6 * nsp + out_w) * 4)   # f32 temporaries (rough)
    bt_cap = (vmem_budget - 2 * w_bytes - (4 << 20)) // max(row_bytes, 1)
    bt_cap = max(SUBLANE, (bt_cap // SUBLANE) * SUBLANE)
    bt = max(SUBLANE, min(bt, bt_cap))

    B_pad = _round_up(B, bt)
    x_in = x if B_pad == B else jnp.pad(x, ((0, B_pad - B), (0, 0)))

    const = lambda a: pl.BlockSpec(a.shape, lambda i: (0, 0))
    in_specs = [pl.BlockSpec((bt, D), lambda i: (i, 0))] + [const(a) for a in weight_args]

    matmul_flops = 2 * B_pad * (D * 256 + 256 * 128 + 128 * 3 * nsp)
    if interleave:
        matmul_flops += 2 * B_pad * 3 * nsp * out_w
    cost = pl.CostEstimate(
        flops=int(matmul_flops + 12 * B_pad * (256 + 128)),
        transcendentals=int(B_pad * (3 * nsp + 2)),
        bytes_accessed=int(B_pad * D * 4 + B_pad * out_w * out_bytes + w_bytes),
    )

    kernel = drl_trader_kernel_interleaved if interleave else drl_trader_kernel_actionmajor

    out = pl.pallas_call(
        kernel,
        out_shape=jax.ShapeDtypeStruct((B_pad, out_w), out_dtype),
        grid=(B_pad // bt,),
        in_specs=in_specs,
        out_specs=pl.BlockSpec((bt, out_w), lambda i: (i, 0)),
        compiler_params=pltpu.CompilerParams(
            dimension_semantics=("parallel",),
            vmem_limit_bytes=tgt["vmem_cap"]),
        cost_estimate=cost,
    )(x_in, *weight_args)

    if interleave:
        # Already in PyTorch column order; just drop batch/lane padding.
        return out[:B, :3 * n_stocks]

    # Fallback unpack: (B, 3, nsp) -> (B, n_stocks, 3) -> interleaved
    out = out[:B].reshape(B, 3, nsp)[:, :, :n_stocks]
    return jnp.transpose(out, (0, 2, 1)).reshape(B, n_stocks * 3)


def init_params(key, state_dim, n_stocks):
    """Deterministic synthetic init (PyTorch-style uniform fan-in bounds)."""
    ks = jax.random.split(key, 6)

    def linear(kw, kb, fan_in, fan_out):
        bound = 1.0 / jnp.sqrt(fan_in)
        w = jax.random.uniform(kw, (fan_in, fan_out), jnp.float32, -bound, bound)
        b = jax.random.uniform(kb, (1, fan_out), jnp.float32, -bound, bound)
        return w, b

    w1, b1 = linear(ks[0], ks[1], state_dim, 256)
    w2, b2 = linear(ks[2], ks[3], 256, 128)
    w3, b3 = linear(ks[4], ks[5], 128, n_stocks * 3)
    return dict(
        w1=w1, b1=b1,
        g1=jnp.ones((1, 256), jnp.float32), be1=jnp.zeros((1, 256), jnp.float32),
        w2=w2, b2=b2,
        g2=jnp.ones((1, 128), jnp.float32), be2=jnp.zeros((1, 128), jnp.float32),
        w3=w3, b3=b3,
    )


def reference_forward(x, params, n_stocks, *, matmul_dtype=jnp.float32):
    """Pure-JAX reference mirroring the PyTorch module (eval mode)."""
    cast = lambda a: a.astype(matmul_dtype)
    dot = lambda a, b: jnp.dot(cast(a), cast(b),
                               preferred_element_type=jnp.float32)
    h = jnp.maximum(dot(x, params["w1"]) + params["b1"], 0.0)
    h = _layernorm(h, params["g1"], params["be1"])
    h = jnp.maximum(dot(h, params["w2"]) + params["b2"], 0.0)
    h = _layernorm(h, params["g2"], params["be2"])
    logits = dot(h, params["w3"]) + params["b3"]
    p = jax.nn.softmax(logits.reshape(-1, n_stocks, 3), axis=2)
    return p.reshape(-1, n_stocks * 3)


if __name__ == "__main__":
    B = 8           # batch
    STATE_DIM = 16  # state_dim
    N_STOCKS = 4    # n_stocks -> output 12

    key = jax.random.PRNGKey(0)
    kx, kp = jax.random.split(key)
    x = jax.random.normal(kx, (B, STATE_DIM), jnp.float32)
    params = init_params(kp, STATE_DIM, N_STOCKS)
    prep = prepare_params(params, N_STOCKS, use_bf16=True)

    out = drl_trader_forward(x, prep)
    out = jax.block_until_ready(out)
    assert out.shape == (B, N_STOCKS * 3)

    # check vs a reference using the same bf16-matmul / f32-accum main path
    # (small slack for the f32 permutation matmul in the kernel epilogue)
    ref_bf16 = reference_forward(x, params, N_STOCKS, matmul_dtype=jnp.bfloat16)
    assert jnp.allclose(out, ref_bf16, atol=2e-3, rtol=2e-3), (
        f"max abs err vs bf16 ref {jnp.max(jnp.abs(out - ref_bf16))}")

    # sanity check vs the full-f32 PyTorch-equivalent reference
    ref_f32 = reference_forward(x, params, N_STOCKS, matmul_dtype=jnp.float32)
    assert jnp.allclose(out, ref_f32, atol=5e-2), (
        f"bf16 drift vs f32 ref {jnp.max(jnp.abs(out - ref_f32))}")

    # per-stock action probabilities must sum to 1
    assert jnp.allclose(out.reshape(B, N_STOCKS, 3).sum(-1), 1.0, atol=1e-4)

    print("KERNEL_OK")
</pallas_src>

<mosaic_0001>
module attributes {stable_mosaic.version = 11 : i64} {
  func.func @drl_trader_kernel_interleaved(%arg0: i32, %arg1: memref<16x16xf32, #tpu.memory_space<vmem>>, %arg2: memref<16x256xbf16, #tpu.memory_space<vmem>>, %arg3: memref<1x256xf32, #tpu.memory_space<vmem>>, %arg4: memref<1x256xf32, #tpu.memory_space<vmem>>, %arg5: memref<1x256xf32, #tpu.memory_space<vmem>>, %arg6: memref<256x128xbf16, #tpu.memory_space<vmem>>, %arg7: memref<1x128xf32, #tpu.memory_space<vmem>>, %arg8: memref<1x128xf32, #tpu.memory_space<vmem>>, %arg9: memref<1x128xf32, #tpu.memory_space<vmem>>, %arg10: memref<128x384xbf16, #tpu.memory_space<vmem>>, %arg11: memref<1x384xf32, #tpu.memory_space<vmem>>, %arg12: memref<384x128xf32, #tpu.memory_space<vmem>>, %arg13: memref<16x128xf32, #tpu.memory_space<vmem>>) attributes {dimension_semantics = [#tpu.dimension_semantics<parallel>], iteration_bounds = array<i64: 1>, scalar_prefetch = 0 : i64, scratch_operands = 0 : i64, tpu.core_type = #tpu.core_type<tc>, window_params = [{transform_indices = @transform_0, window_bounds = array<i64: 16, 16>}, {pipeline_mode = #tpu.pipeline_mode<synchronous>, transform_indices = @transform_1, window_bounds = array<i64: 16, 256>}, {pipeline_mode = #tpu.pipeline_mode<synchronous>, transform_indices = @transform_2, window_bounds = array<i64: 1, 256>}, {pipeline_mode = #tpu.pipeline_mode<synchronous>, transform_indices = @transform_3, window_bounds = array<i64: 1, 256>}, {pipeline_mode = #tpu.pipeline_mode<synchronous>, transform_indices = @transform_4, window_bounds = array<i64: 1, 256>}, {pipeline_mode = #tpu.pipeline_mode<synchronous>, transform_indices = @transform_5, window_bounds = array<i64: 256, 128>}, {pipeline_mode = #tpu.pipeline_mode<synchronous>, transform_indices = @transform_6, window_bounds = array<i64: 1, 128>}, {pipeline_mode = #tpu.pipeline_mode<synchronous>, transform_indices = @transform_7, window_bounds = array<i64: 1, 128>}, {pipeline_mode = #tpu.pipeline_mode<synchronous>, transform_indices = @transform_8, window_bounds = array<i64: 1, 128>}, {pipeline_mode = #tpu.pipeline_mode<synchronous>, transform_indices = @transform_9, window_bounds = array<i64: 128, 384>}, {pipeline_mode = #tpu.pipeline_mode<synchronous>, transform_indices = @transform_10, window_bounds = array<i64: 1, 384>}, {pipeline_mode = #tpu.pipeline_mode<synchronous>, transform_indices = @transform_11, window_bounds = array<i64: 384, 128>}, {transform_indices = @transform_12, window_bounds = array<i64: 16, 128>}]} {
    %c0 = arith.constant 0 : index
    %c0_0 = arith.constant 0 : index
    %0 = vector.load %arg1[%c0, %c0_0] : memref<16x16xf32, #tpu.memory_space<vmem>>, vector<16x16xf32>
    %1 = arith.truncf %0 : vector<16x16xf32> to vector<16x16xbf16>
    %c0_1 = arith.constant 0 : index
    %c0_2 = arith.constant 0 : index
    %2 = vector.load %arg2[%c0_1, %c0_2] : memref<16x256xbf16, #tpu.memory_space<vmem>>, vector<16x256xbf16>
    %cst = arith.constant dense<0.000000e+00> : vector<16x256xf32>
    %3 = tpu.matmul %1, %2, %cst {dimension_numbers = #tpu.dot_dimension_numbers<[1], [0], [0], [1], [0, 0, 1, 1], [], []>} : vector<16x16xbf16>, vector<16x256xbf16>, vector<16x256xf32> -> vector<16x256xf32>
    %c0_3 = arith.constant 0 : index
    %c0_4 = arith.constant 0 : index
    %4 = vector.load %arg3[%c0_3, %c0_4] : memref<1x256xf32, #tpu.memory_space<vmem>>, vector<1x256xf32>
    %5 = vector.broadcast %4 : vector<1x256xf32> to vector<16x256xf32>
    %6 = arith.addf %3, %5 : vector<16x256xf32>
    %cst_5 = arith.constant 0.000000e+00 : f32
    %7 = vector.broadcast %cst_5 : f32 to vector<16x256xf32>
    %8 = arith.maximumf %6, %7 : vector<16x256xf32>
    %c0_6 = arith.constant 0 : index
    %c0_7 = arith.constant 0 : index
    %9 = vector.load %arg4[%c0_6, %c0_7] : memref<1x256xf32, #tpu.memory_space<vmem>>, vector<1x256xf32>
    %c0_8 = arith.constant 0 : index
    %c0_9 = arith.constant 0 : index
    %10 = vector.load %arg5[%c0_8, %c0_9] : memref<1x256xf32, #tpu.memory_space<vmem>>, vector<1x256xf32>
    %cst_10 = arith.constant dense<0.000000e+00> : vector<16xf32>
    %11 = vector.multi_reduction <add>, %8, %cst_10 [1] : vector<16x256xf32> to vector<16xf32>
    %12 = vector.shape_cast %11 : vector<16xf32> to vector<16x1xf32>
    %cst_11 = arith.constant 2.560000e+02 : f32
    %13 = vector.broadcast %cst_11 : f32 to vector<16x1xf32>
    %14 = arith.divf %12, %13 : vector<16x1xf32>
    %15 = vector.broadcast %14 : vector<16x1xf32> to vector<16x256xf32>
    %16 = arith.subf %8, %15 : vector<16x256xf32>
    %17 = arith.mulf %16, %16 : vector<16x256xf32>
    %cst_12 = arith.constant dense<0.000000e+00> : vector<16xf32>
    %18 = vector.multi_reduction <add>, %17, %cst_12 [1] : vector<16x256xf32> to vector<16xf32>
    %19 = vector.shape_cast %18 : vector<16xf32> to vector<16x1xf32>
    %cst_13 = arith.constant 2.560000e+02 : f32
    %20 = vector.broadcast %cst_13 : f32 to vector<16x1xf32>
    %21 = arith.divf %19, %20 : vector<16x1xf32>
    %cst_14 = arith.constant 9.99999974E-6 : f32
    %22 = vector.broadcast %cst_14 : f32 to vector<16x1xf32>
    %23 = arith.addf %21, %22 : vector<16x1xf32>
    %24 = math.rsqrt %23 : vector<16x1xf32>
    %25 = vector.broadcast %24 : vector<16x1xf32> to vector<16x256xf32>
    %26 = arith.mulf %16, %25 : vector<16x256xf32>
    %27 = vector.broadcast %9 : vector<1x256xf32> to vector<16x256xf32>
    %28 = arith.mulf %26, %27 : vector<16x256xf32>
    %29 = vector.broadcast %10 : vector<1x256xf32> to vector<16x256xf32>
    %30 = arith.addf %28, %29 : vector<16x256xf32>
    %31 = arith.truncf %30 : vector<16x256xf32> to vector<16x256xbf16>
    %c0_15 = arith.constant 0 : index
    %c0_16 = arith.constant 0 : index
    %32 = vector.load %arg6[%c0_15, %c0_16] : memref<256x128xbf16, #tpu.memory_space<vmem>>, vector<256x128xbf16>
    %cst_17 = arith.constant dense<0.000000e+00> : vector<16x128xf32>
    %33 = tpu.matmul %31, %32, %cst_17 {dimension_numbers = #tpu.dot_dimension_numbers<[1], [0], [0], [1], [0, 0, 1, 1], [], []>} : vector<16x256xbf16>, vector<256x128xbf16>, vector<16x128xf32> -> vector<16x128xf32>
    %c0_18 = arith.constant 0 : index
    %c0_19 = arith.constant 0 : index
    %34 = vector.load %arg7[%c0_18, %c0_19] : memref<1x128xf32, #tpu.memory_space<vmem>>, vector<1x128xf32>
    %35 = vector.broadcast %34 : vector<1x128xf32> to vector<16x128xf32>
    %36 = arith.addf %33, %35 : vector<16x128xf32>
    %cst_20 = arith.constant 0.000000e+00 : f32
    %37 = vector.broadcast %cst_20 : f32 to vector<16x128xf32>
    %38 = arith.maximumf %36, %37 : vector<16x128xf32>
    %c0_21 = arith.constant 0 : index
    %c0_22 = arith.constant 0 : index
    %39 = vector.load %arg8[%c0_21, %c0_22] : memref<1x128xf32, #tpu.memory_space<vmem>>, vector<1x128xf32>
    %c0_23 = arith.constant 0 : index
    %c0_24 = arith.constant 0 : index
    %40 = vector.load %arg9[%c0_23, %c0_24] : memref<1x128xf32, #tpu.memory_space<vmem>>, vector<1x128xf32>
    %cst_25 = arith.constant dense<0.000000e+00> : vector<16xf32>
    %41 = vector.multi_reduction <add>, %38, %cst_25 [1] : vector<16x128xf32> to vector<16xf32>
    %42 = vector.shape_cast %41 : vector<16xf32> to vector<16x1xf32>
    %cst_26 = arith.constant 1.280000e+02 : f32
    %43 = vector.broadcast %cst_26 : f32 to vector<16x1xf32>
    %44 = arith.divf %42, %43 : vector<16x1xf32>
    %45 = vector.broadcast %44 : vector<16x1xf32> to vector<16x128xf32>
    %46 = arith.subf %38, %45 : vector<16x128xf32>
    %47 = arith.mulf %46, %46 : vector<16x128xf32>
    %cst_27 = arith.constant dense<0.000000e+00> : vector<16xf32>
    %48 = vector.multi_reduction <add>, %47, %cst_27 [1] : vector<16x128xf32> to vector<16xf32>
    %49 = vector.shape_cast %48 : vector<16xf32> to vector<16x1xf32>
    %cst_28 = arith.constant 1.280000e+02 : f32
    %50 = vector.broadcast %cst_28 : f32 to vector<16x1xf32>
    %51 = arith.divf %49, %50 : vector<16x1xf32>
    %cst_29 = arith.constant 9.99999974E-6 : f32
    %52 = vector.broadcast %cst_29 : f32 to vector<16x1xf32>
    %53 = arith.addf %51, %52 : vector<16x1xf32>
    %54 = math.rsqrt %53 : vector<16x1xf32>
    %55 = vector.broadcast %54 : vector<16x1xf32> to vector<16x128xf32>
    %56 = arith.mulf %46, %55 : vector<16x128xf32>
    %57 = vector.broadcast %39 : vector<1x128xf32> to vector<16x128xf32>
    %58 = arith.mulf %56, %57 : vector<16x128xf32>
    %59 = vector.broadcast %40 : vector<1x128xf32> to vector<16x128xf32>
    %60 = arith.addf %58, %59 : vector<16x128xf32>
    %61 = arith.truncf %60 : vector<16x128xf32> to vector<16x128xbf16>
    %c0_30 = arith.constant 0 : index
    %c0_31 = arith.constant 0 : index
    %62 = vector.load %arg10[%c0_30, %c0_31] : memref<128x384xbf16, #tpu.memory_space<vmem>>, vector<128x384xbf16>
    %cst_32 = arith.constant dense<0.000000e+00> : vector<16x384xf32>
    %63 = tpu.matmul %61, %62, %cst_32 {dimension_numbers = #tpu.dot_dimension_numbers<[1], [0], [0], [1], [0, 0, 1, 1], [], []>} : vector<16x128xbf16>, vector<128x384xbf16>, vector<16x384xf32> -> vector<16x384xf32>
    %c0_33 = arith.constant 0 : index
    %c0_34 = arith.constant 0 : index
    %64 = vector.load %arg11[%c0_33, %c0_34] : memref<1x384xf32, #tpu.memory_space<vmem>>, vector<1x384xf32>
    %65 = vector.broadcast %64 : vector<1x384xf32> to vector<16x384xf32>
    %66 = arith.addf %63, %65 : vector<16x384xf32>
    %67 = vector.extract_strided_slice %66 {offsets = [0, 0], sizes = [16, 128], strides = [1, 1]} : vector<16x384xf32> to vector<16x128xf32>
    %68 = vector.extract_strided_slice %66 {offsets = [0, 128], sizes = [16, 128], strides = [1, 1]} : vector<16x384xf32> to vector<16x128xf32>
    %69 = vector.extract_strided_slice %66 {offsets = [0, 256], sizes = [16, 128], strides = [1, 1]} : vector<16x384xf32> to vector<16x128xf32>
    %70 = arith.maximumf %67, %68 : vector<16x128xf32>
    %71 = arith.maximumf %70, %69 : vector<16x128xf32>
    %72 = arith.subf %67, %71 : vector<16x128xf32>
    %73 = math.exp %72 : vector<16x128xf32>
    %74 = arith.subf %68, %71 : vector<16x128xf32>
    %75 = math.exp %74 : vector<16x128xf32>
    %76 = arith.subf %69, %71 : vector<16x128xf32>
    %77 = math.exp %76 : vector<16x128xf32>
    %78 = arith.addf %73, %75 : vector<16x128xf32>
    %79 = arith.addf %78, %77 : vector<16x128xf32>
    %cst_35 = arith.constant 1.000000e+00 : f32
    %80 = vector.broadcast %cst_35 : f32 to vector<16x128xf32>
    %81 = arith.divf %80, %79 : vector<16x128xf32>
    %82 = arith.mulf %73, %81 : vector<16x128xf32>
    %83 = arith.mulf %75, %81 : vector<16x128xf32>
    %84 = arith.mulf %77, %81 : vector<16x128xf32>
    %c0_36 = arith.constant 0 : index
    %c0_37 = arith.constant 0 : index
    %85 = vector.load %arg12[%c0_36, %c0_37] : memref<384x128xf32, #tpu.memory_space<vmem>>, vector<384x128xf32>
    %86 = vector.extract_strided_slice %85 {offsets = [0, 0], sizes = [128, 128], strides = [1, 1]} : vector<384x128xf32> to vector<128x128xf32>
    %cst_38 = arith.constant dense<0.000000e+00> : vector<16x128xf32>
    %87 = tpu.matmul %82, %86, %cst_38 {dimension_numbers = #tpu.dot_dimension_numbers<[1], [0], [0], [1], [0, 0, 1, 1], [], []>} : vector<16x128xf32>, vector<128x128xf32>, vector<16x128xf32> -> vector<16x128xf32>
    %88 = vector.extract_strided_slice %85 {offsets = [128, 0], sizes = [128, 128], strides = [1, 1]} : vector<384x128xf32> to vector<128x128xf32>
    %cst_39 = arith.constant dense<0.000000e+00> : vector<16x128xf32>
    %89 = tpu.matmul %83, %88, %cst_39 {dimension_numbers = #tpu.dot_dimension_numbers<[1], [0], [0], [1], [0, 0, 1, 1], [], []>} : vector<16x128xf32>, vector<128x128xf32>, vector<16x128xf32> -> vector<16x128xf32>
    %90 = arith.addf %87, %89 : vector<16x128xf32>
    %91 = vector.extract_strided_slice %85 {offsets = [256, 0], sizes = [128, 128], strides = [1, 1]} : vector<384x128xf32> to vector<128x128xf32>
    %cst_40 = arith.constant dense<0.000000e+00> : vector<16x128xf32>
    %92 = tpu.matmul %84, %91, %cst_40 {dimension_numbers = #tpu.dot_dimension_numbers<[1], [0], [0], [1], [0, 0, 1, 1], [], []>} : vector<16x128xf32>, vector<128x128xf32>, vector<16x128xf32> -> vector<16x128xf32>
    %93 = arith.addf %90, %92 : vector<16x128xf32>
    %c0_41 = arith.constant 0 : index
    %c0_42 = arith.constant 0 : index
    %94 = vector.load %arg13[%c0_41, %c0_42] : memref<16x128xf32, #tpu.memory_space<vmem>>, vector<16x128xf32>
    tpu.vector_store %arg13[%c0_41, %c0_42], %93 {strides = array<i32>} : memref<16x128xf32, #tpu.memory_space<vmem>>, vector<16x128xf32>,
    return
  }
  func.func @transform_0(%arg0: i32) -> (i32, i32) {
    %c0_i32 = arith.constant 0 : i32
    %c0_i32_0 = arith.constant 0 : i32
    return %arg0, %c0_i32 : i32, i32
  }
  func.func @transform_1(%arg0: i32) -> (i32, i32) {
    %c0_i32 = arith.constant 0 : i32
    %c0_i32_0 = arith.constant 0 : i32
    %c0_i32_1 = arith.constant 0 : i32
    return %c0_i32, %c0_i32_0 : i32, i32
  }
  func.func @transform_2(%arg0: i32) -> (i32, i32) {
    %c0_i32 = arith.constant 0 : i32
    %c0_i32_0 = arith.constant 0 : i32
    %c0_i32_1 = arith.constant 0 : i32
    return %c0_i32, %c0_i32_0 : i32, i32
  }
  func.func @transform_3(%arg0: i32) -> (i32, i32) {
    %c0_i32 = arith.constant 0 : i32
    %c0_i32_0 = arith.constant 0 : i32
    %c0_i32_1 = arith.constant 0 : i32
    return %c0_i32, %c0_i32_0 : i32, i32
  }
  func.func @transform_4(%arg0: i32) -> (i32, i32) {
    %c0_i32 = arith.constant 0 : i32
    %c0_i32_0 = arith.constant 0 : i32
    %c0_i32_1 = arith.constant 0 : i32
    return %c0_i32, %c0_i32_0 : i32, i32
  }
  func.func @transform_5(%arg0: i32) -> (i32, i32) {
    %c0_i32 = arith.constant 0 : i32
    %c0_i32_0 = arith.constant 0 : i32
    %c0_i32_1 = arith.constant 0 : i32
    return %c0_i32, %c0_i32_0 : i32, i32
  }
  func.func @transform_6(%arg0: i32) -> (i32, i32) {
    %c0_i32 = arith.constant 0 : i32
    %c0_i32_0 = arith.constant 0 : i32
    %c0_i32_1 = arith.constant 0 : i32
    return %c0_i32, %c0_i32_0 : i32, i32
  }
  func.func @transform_7(%arg0: i32) -> (i32, i32) {
    %c0_i32 = arith.constant 0 : i32
    %c0_i32_0 = arith.constant 0 : i32
    %c0_i32_1 = arith.constant 0 : i32
    return %c0_i32, %c0_i32_0 : i32, i32
  }
  func.func @transform_8(%arg0: i32) -> (i32, i32) {
    %c0_i32 = arith.constant 0 : i32
    %c0_i32_0 = arith.constant 0 : i32
    %c0_i32_1 = arith.constant 0 : i32
    return %c0_i32, %c0_i32_0 : i32, i32
  }
  func.func @transform_9(%arg0: i32) -> (i32, i32) {
    %c0_i32 = arith.constant 0 : i32
    %c0_i32_0 = arith.constant 0 : i32
    %c0_i32_1 = arith.constant 0 : i32
    return %c0_i32, %c0_i32_0 : i32, i32
  }
  func.func @transform_10(%arg0: i32) -> (i32, i32) {
    %c0_i32 = arith.constant 0 : i32
    %c0_i32_0 = arith.constant 0 : i32
    %c0_i32_1 = arith.constant 0 : i32
    return %c0_i32, %c0_i32_0 : i32, i32
  }
  func.func @transform_11(%arg0: i32) -> (i32, i32) {
    %c0_i32 = arith.constant 0 : i32
    %c0_i32_0 = arith.constant 0 : i32
    %c0_i32_1 = arith.constant 0 : i32
    return %c0_i32, %c0_i32_0 : i32, i32
  }
  func.func @transform_12(%arg0: i32) -> (i32, i32) {
    %c0_i32 = arith.constant 0 : i32
    %c0_i32_0 = arith.constant 0 : i32
    return %arg0, %c0_i32 : i32, i32
  }
}

</mosaic_0001>

<llo_original>
// kernel: tpu_custom_call.1
$region0: #{tpu_custom_call.1}
  #allocation0 [shape = 'u32[]', space=smem, size = 0x4, offset = 0x4, fixed_abs, tag = 'smem constant byte address 0x4 - core index']
  #allocation1 [shape = 'u32[72,128]{1,0:T(1,128)}', space=vmem, size = 0x9000, scoped, tag = 'internal scratch']
  %s0 = inlined_call_operand.hbm [shape: f32[16,16], index: 0, kind: input, shape index: {}]
  %s1 = inlined_call_operand.hbm [shape: bf16[16,256], index: 1, kind: input, shape index: {}]
  %s2 = inlined_call_operand.hbm [shape: f32[1,256], index: 2, kind: input, shape index: {}]
  %s3 = inlined_call_operand.vmem [shape: f32[1,256], index: 3, kind: input, shape index: {}]
  %s4 = inlined_call_operand.hbm [shape: f32[1,256], index: 4, kind: input, shape index: {}]
  %s5 = inlined_call_operand.hbm [shape: bf16[256,128], index: 5, kind: input, shape index: {}]
  %s6 = inlined_call_operand.hbm [shape: f32[1,128], index: 6, kind: input, shape index: {}]
  %s7 = inlined_call_operand.vmem [shape: f32[1,128], index: 7, kind: input, shape index: {}]
  %s8 = inlined_call_operand.vmem [shape: f32[1,128], index: 8, kind: input, shape index: {}]
  %s9 = inlined_call_operand.hbm [shape: bf16[128,384], index: 9, kind: input, shape index: {}]
  %s10 = inlined_call_operand.vmem [shape: f32[1,384], index: 10, kind: input, shape index: {}]
  %s11 = inlined_call_operand.hbm [shape: f32[384,128], index: 11, kind: input, shape index: {}]
  %s12 = inlined_call_operand.hbm [shape: f32[16,128], index: 12, kind: output, shape index: {}]
  %s13 = sld [smem:[#allocation0]]
  $region90: #{tpu_custom_call.1} parent=0
    _
  %s15 = ssub.s32 1, %s13
  %s16 = scalar_select 0, %s15, %s13
  $region1: #{tpu_custom_call.1} parent=0
    #allocation2 [shape = 'u8[8192]{0}', space=vmem, size = 0x2000, scoped, tag = 'input window, operand 0, single buffered']
    #allocation3 [shape = 's32[1]{0}', space=sflag, size = 0x4, scoped, tag = 'scoped memory for tpu_custom_call.1']
    #allocation4 [shape = 's32[1]{0}', space=sflag, size = 0x4, scoped, tag = 'scoped memory for tpu_custom_call.1']
    #allocation5 [shape = 'u8[8192]{0}', space=vmem, size = 0x2000, scoped, tag = 'input window, operand 1, single buffered']
    #allocation6 [shape = 's32[1]{0}', space=sflag, size = 0x4, scoped, tag = 'scoped memory for tpu_custom_call.1']
    #allocation7 [shape = 'u8[1024]{0}', space=vmem, size = 0x400, scoped, tag = 'input window, operand 2, single buffered']
    #allocation8 [shape = 'u8[1024]{0}', space=vmem, size = 0x400, scoped, tag = 'input window, operand 4, single buffered']
    #allocation9 [shape = 's32[1]{0}', space=sflag, size = 0x4, scoped, tag = 'scoped memory for tpu_custom_call.1']
    #allocation10 [shape = 'u8[65536]{0}', space=vmem, size = 0x10000, scoped, tag = 'input window, operand 5, single buffered']
    #allocation11 [shape = 'u8[512]{0}', space=vmem, size = 0x400, scoped, tag = 'input window, operand 6, single buffered']
    #allocation12 [shape = 's32[1]{0}', space=sflag, size = 0x4, scoped, tag = 'scoped memory for tpu_custom_call.1']
    #allocation13 [shape = 'u8[98304]{0}', space=vmem, size = 0x18000, scoped, tag = 'input window, operand 9, single buffered']
    #allocation14 [shape = 'u8[196608]{0}', space=vmem, size = 0x30000, scoped, tag = 'input window, operand 11, single buffered']
    #allocation15 [shape = 's32[1]{0}', space=sflag, size = 0x4, scoped, tag = 'scoped memory for tpu_custom_call.1']
    #allocation16 [shape = 'u8[8192]{0}', space=vmem, size = 0x2000, scoped, tag = 'output window, operand 0, single buffered']
    %17 = vsyncpa [#allocation3], 0
    %18 = vsyncpa [#allocation6], 0
    %19 = vsyncpa [#allocation9], 0
    %20 = vsyncpa [#allocation12], 0
    %21 = vsyncpa [#allocation15], 0
    %22 = vsyncpa [#allocation4], 0
    // Predicated region
    $region2: #{tpu_custom_call.1} parent=1 // pred_check
      _
    $region3: #{tpu_custom_call.1} parent=1 // pred_check_branch
      %24 = sbr.rel (0) target = $region5
    $region4: #{tpu_custom_call.1} parent=1 // pred_region
      %26 = vsyncadd [#allocation3], 0
      %s27 = sshll.u32 %s0, 4
      %s28 = int_to_ptr.hbm [resolvable:$true] %s27
      %s29 = sshll.u32 [#allocation2], 4
      %s30 = int_to_ptr.vmem [resolvable:$true] %s29
      %35 = dma.hbm_to_vmem [thread:$0]  %s28, 256, %s30, [#allocation3], 128, 128, 8
    $region5: #{tpu_custom_call.1} parent=1 // pred_fallthru
      _
    // Predicated region
    $region6: #{tpu_custom_call.1} parent=1 // pred_check
      _
    $region7: #{tpu_custom_call.1} parent=1 // pred_check_branch
      %37 = sbr.rel (0) target = $region9
    $region8: #{tpu_custom_call.1} parent=1 // pred_region
      %39 = vsyncadd [#allocation6], 0
      %s40 = sshll.u32 %s1, 4
      %s41 = int_to_ptr.hbm [resolvable:$true] %s40
      %s42 = sshll.u32 [#allocation5], 4
      %s43 = int_to_ptr.vmem [resolvable:$true] %s42
      %48 = dma.hbm_to_vmem [thread:$0]  %s41, 256, %s43, [#allocation6], 128, 128, 8
    $region9: #{tpu_custom_call.1} parent=1 // pred_fallthru
      _
    // Predicated region
    $region10: #{tpu_custom_call.1} parent=1 // pred_check
      _
    $region11: #{tpu_custom_call.1} parent=1 // pred_check_branch
      %50 = sbr.rel (0) target = $region13
    $region12: #{tpu_custom_call.1} parent=1 // pred_region
      %52 = vsyncadd [#allocation6], 0
      %s54 = sshll.u32 %s2, 4
      %s55 = int_to_ptr.hbm [resolvable:$true] %s54
      %s56 = sshll.u32 [#allocation7], 4
      %s57 = int_to_ptr.vmem [resolvable:$true] %s56
      %59 = dma.hbm_to_vmem [thread:$0]  %s55, 32, %s57, [#allocation6]
    $region13: #{tpu_custom_call.1} parent=1 // pred_fallthru
      _
    // Predicated region
    $region14: #{tpu_custom_call.1} parent=1 // pred_check
      _
    $region15: #{tpu_custom_call.1} parent=1 // pred_check_branch
      %61 = sbr.rel (0) target = $region17
    $region16: #{tpu_custom_call.1} parent=1 // pred_region
      _
    $region17: #{tpu_custom_call.1} parent=1 // pred_fallthru
      _
    // Predicated region
    $region18: #{tpu_custom_call.1} parent=1 // pred_check
      _
    $region19: #{tpu_custom_call.1} parent=1 // pred_check_branch
      %63 = sbr.rel (0) target = $region21
    $region20: #{tpu_custom_call.1} parent=1 // pred_region
      %65 = vsyncadd [#allocation9], 0
      %s67 = sshll.u32 %s4, 4
      %s68 = int_to_ptr.hbm [resolvable:$true] %s67
      %s69 = sshll.u32 [#allocation8], 4
      %s70 = int_to_ptr.vmem [resolvable:$true] %s69
      %72 = dma.hbm_to_vmem [thread:$0]  %s68, 32, %s70, [#allocation9]
    $region21: #{tpu_custom_call.1} parent=1 // pred_fallthru
      _
    // Predicated region
    $region22: #{tpu_custom_call.1} parent=1 // pred_check
      _
    $region23: #{tpu_custom_call.1} parent=1 // pred_check_branch
      %74 = sbr.rel (0) target = $region25
    $region24: #{tpu_custom_call.1} parent=1 // pred_region
      %76 = vsyncadd [#allocation9], 0
      %s77 = sshll.u32 %s5, 4
      %s78 = int_to_ptr.hbm [resolvable:$true] %s77
      %s79 = sshll.u32 [#allocation10], 4
      %s80 = int_to_ptr.vmem [resolvable:$true] %s79
      %85 = dma.hbm_to_vmem [thread:$0]  %s78, 2048, %s80, [#allocation9], 64, 64, 4
    $region25: #{tpu_custom_call.1} parent=1 // pred_fallthru
      _
    // Predicated region
    $region26: #{tpu_custom_call.1} parent=1 // pred_check
      _
    $region27: #{tpu_custom_call.1} parent=1 // pred_check_branch
      %87 = sbr.rel (0) target = $region29
    $region28: #{tpu_custom_call.1} parent=1 // pred_region
      %89 = vsyncadd [#allocation12], 0
      %s91 = sshll.u32 %s6, 4
      %s92 = int_to_ptr.hbm [resolvable:$true] %s91
      %s93 = sshll.u32 [#allocation11], 4
      %s94 = int_to_ptr.vmem [resolvable:$true] %s93
      %96 = dma.hbm_to_vmem [thread:$0]  %s92, 16, %s94, [#allocation12]
    $region29: #{tpu_custom_call.1} parent=1 // pred_fallthru
      _
    // Predicated region
    $region30: #{tpu_custom_call.1} parent=1 // pred_check
      _
    $region31: #{tpu_custom_call.1} parent=1 // pred_check_branch
      %98 = sbr.rel (0) target = $region33
    $region32: #{tpu_custom_call.1} parent=1 // pred_region
      _
    $region33: #{tpu_custom_call.1} parent=1 // pred_fallthru
      _
    // Predicated region
    $region34: #{tpu_custom_call.1} parent=1 // pred_check
      _
    $region35: #{tpu_custom_call.1} parent=1 // pred_check_branch
      %100 = sbr.rel (0) target = $region37
    $region36: #{tpu_custom_call.1} parent=1 // pred_region
      _
    $region37: #{tpu_custom_call.1} parent=1 // pred_fallthru
      _
    // Predicated region
    $region38: #{tpu_custom_call.1} parent=1 // pred_check
      _
    $region39: #{tpu_custom_call.1} parent=1 // pred_check_branch
      %102 = sbr.rel (0) target = $region41
    $region40: #{tpu_custom_call.1} parent=1 // pred_region
      %104 = vsyncadd [#allocation12], 0
      %s105 = sshll.u32 %s9, 4
      %s106 = int_to_ptr.hbm [resolvable:$true] %s105
      %s107 = sshll.u32 [#allocation13], 4
      %s108 = int_to_ptr.vmem [resolvable:$true] %s107
      %113 = dma.hbm_to_vmem [thread:$0]  %s106, 3072, %s108, [#allocation12], 192, 192, 12
    $region41: #{tpu_custom_call.1} parent=1 // pred_fallthru
      _
    // Predicated region
    $region42: #{tpu_custom_call.1} parent=1 // pred_check
      _
    $region43: #{tpu_custom_call.1} parent=1 // pred_check_branch
      %115 = sbr.rel (0) target = $region45
    $region44: #{tpu_custom_call.1} parent=1 // pred_region
      _
    $region45: #{tpu_custom_call.1} parent=1 // pred_fallthru
      _
    // Predicated region
    $region46: #{tpu_custom_call.1} parent=1 // pred_check
      _
    $region47: #{tpu_custom_call.1} parent=1 // pred_check_branch
      %117 = sbr.rel (0) target = $region49
    $region48: #{tpu_custom_call.1} parent=1 // pred_region
      %119 = vsyncadd [#allocation15], 0
      %s120 = sshll.u32 %s11, 4
      %s121 = int_to_ptr.hbm [resolvable:$true] %s120
      %s122 = sshll.u32 [#allocation14], 4
      %s123 = int_to_ptr.vmem [resolvable:$true] %s122
      %128 = dma.hbm_to_vmem [thread:$0]  %s121, 6144, %s123, [#allocation15], 128, 128, 8
    $region49: #{tpu_custom_call.1} parent=1 // pred_fallthru
      _
    // Predicated region
    $region50: #{tpu_custom_call.1} parent=1 // pred_check
      _
    $region51: #{tpu_custom_call.1} parent=1 // pred_check_branch
      %130 = sbr.rel (0) target = $region53
    $region52: #{tpu_custom_call.1} parent=1 // pred_region
      %132 = dma.done [#allocation3], 256
    $region53: #{tpu_custom_call.1} parent=1 // pred_fallthru
      _
    // Predicated region
    $region54: #{tpu_custom_call.1} parent=1 // pred_check
      _
    $region55: #{tpu_custom_call.1} parent=1 // pred_check_branch
      %134 = sbr.rel (0) target = $region57
    $region56: #{tpu_custom_call.1} parent=1 // pred_region
      %136 = dma.done [#allocation6], 256
    $region57: #{tpu_custom_call.1} parent=1 // pred_fallthru
      _
    // Predicated region
    $region58: #{tpu_custom_call.1} parent=1 // pred_check
      _
    $region59: #{tpu_custom_call.1} parent=1 // pred_check_branch
      %138 = sbr.rel (0) target = $region61
    $region60: #{tpu_custom_call.1} parent=1 // pred_region
      %140 = dma.done [#allocation6], 32
    $region61: #{tpu_custom_call.1} parent=1 // pred_fallthru
      _
    // Predicated region
    $region62: #{tpu_custom_call.1} parent=1 // pred_check
      _
    $region63: #{tpu_custom_call.1} parent=1 // pred_check_branch
      %142 = sbr.rel (0) target = $region65
    $region64: #{tpu_custom_call.1} parent=1 // pred_region
      %144 = dma.done [#allocation9], 32
    $region65: #{tpu_custom_call.1} parent=1 // pred_fallthru
      _
    // Predicated region
    $region66: #{tpu_custom_call.1} parent=1 // pred_check
      _
    $region67: #{tpu_custom_call.1} parent=1 // pred_check_branch
      %146 = sbr.rel (0) target = $region69
    $region68: #{tpu_custom_call.1} parent=1 // pred_region
      %148 = dma.done [#allocation9], 2048
    $region69: #{tpu_custom_call.1} parent=1 // pred_fallthru
      _
    // Predicated region
    $region70: #{tpu_custom_call.1} parent=1 // pred_check
      _
    $region71: #{tpu_custom_call.1} parent=1 // pred_check_branch
      %150 = sbr.rel (0) target = $region73
    $region72: #{tpu_custom_call.1} parent=1 // pred_region
      %152 = dma.done [#allocation12], 16
    $region73: #{tpu_custom_call.1} parent=1 // pred_fallthru
      _
    // Predicated region
    $region74: #{tpu_custom_call.1} parent=1 // pred_check
      _
    $region75: #{tpu_custom_call.1} parent=1 // pred_check_branch
      %154 = sbr.rel (0) target = $region77
    $region76: #{tpu_custom_call.1} parent=1 // pred_region
      %156 = dma.done [#allocation12], 3072
    $region77: #{tpu_custom_call.1} parent=1 // pred_fallthru
      _
    // Predicated region
    $region78: #{tpu_custom_call.1} parent=1 // pred_check
      _
    $region79: #{tpu_custom_call.1} parent=1 // pred_check_branch
      %158 = sbr.rel (0) target = $region81
    $region80: #{tpu_custom_call.1} parent=1 // pred_region
      %160 = dma.done [#allocation15], 6144
    $region81: #{tpu_custom_call.1} parent=1 // pred_fallthru
      _
    %v162 = vld [vmem:[#allocation2] sm:$0xff]
    %v163 = vld [vmem:[#allocation2 + $0x8] sm:$0xff]
    %v164 = vpack.c.bf16 %v163, %v162
    %v165 = vld [vmem:[#allocation5] sm:$0xff]
    %v166 = vld [vmem:[#allocation5 + $0x8] sm:$0xff]
    %v167 = vld [vmem:[#allocation7] sm:$0x3]
    %v169 = vperm.slane %v167, 0
    %v170 = vperm.slane %v167, 1
    %v175 = vunpack.c.l.b16 %v165
    %v176 = vunpack.c.h.b16 %v165
    %v177 = vunpack.c.l.b16 %v166
    %v178 = vunpack.c.h.b16 %v166
    %v179 = vpack.c.b16 %v177, %v175
    %v180 = vpack.c.b16 %v178, %v176
    %vm183 = vcmask 130048
    %v185 = vsel %vm183, %v164, 0
    %187 = vmatpush.bf16.msra.mxu0 0
    %188 = vmatpush.bf16.msra.mxu0 0
    %189 = vmatpush.bf16.msra.mxu0 0
    %190 = vmatpush.bf16.msra.mxu0 0
    %191 = vmatpush.bf16.msra.mxu0 0
    %192 = vmatpush.bf16.msra.mxu0 0
    %193 = vmatpush.bf16.msra.mxu0 0
    %194 = vmatpush.bf16.msra.mxu0 %v179
    %195 = vmatmul.bf16.gmra.mxu0 %v185
    %v196 = vpop.f32.mrf.mxu0
    %v197 = vadd.f32 %v169, %v196
    %v198 = vpop.f32.mrf.mxu0
    %v199 = vadd.f32 %v169, %v198
    %200 = vdwg.mxu0
    %201 = vmatpush.bf16.msra.mxu0 0
    %202 = vmatpush.bf16.msra.mxu0 0
    %203 = vmatpush.bf16.msra.mxu0 0
    %204 = vmatpush.bf16.msra.mxu0 0
    %205 = vmatpush.bf16.msra.mxu0 0
    %206 = vmatpush.bf16.msra.mxu0 0
    %207 = vmatpush.bf16.msra.mxu0 0
    %208 = vmatpush.bf16.msra.mxu0 %v180
    %209 = vmatmul.bf16.gmra.mxu0 %v185
    %v210 = vpop.f32.mrf.mxu0
    %v211 = vadd.f32 %v170, %v210
    %v212 = vpop.f32.mrf.mxu0
    %v213 = vadd.f32 %v170, %v212
    %214 = vdwg.mxu0
    %v215 = vmax.f32 %v197, 0.0
    %v216 = vmax.f32 %v211, 0.0
    %v217 = vmax.f32 %v199, 0.0
    %v218 = vmax.f32 %v213, 0.0
    %v219 = vld [vmem:[%s3] sm:$0x3]
    %v220 = vld [vmem:[#allocation8] sm:$0x3]
    %v221 = vadd.f32 %v215, %v216
    %222 = vadd.xlane.f32.xlu0 %v221
    %v223 = vpop.xlane.xlu0 %222
    %v224 = vadd.f32 %v217, %v218
    %225 = vadd.xlane.f32.xlu0 %v224
    %v226 = vpop.xlane.xlu0 %225
    %v227 = vrcp.pop 256.0
    %v228 = vmul.f32 256.0, %v227
    %v229 = vsub.f32 1.0, %v228
    %v230 = vmul.f32 %v227, %v229
    %v231 = vadd.f32 %v227, %v230
    %vm232 = vweird.f32 %v227
    %v233 = vsel %vm232, %v227, %v231
    %v234 = vmul.f32 %v223, %v233
    %v235 = vmul.f32 %v226, %v233
    %v236 = vsub.f32 %v215, %v234
    %v237 = vsub.f32 %v216, %v234
    %v238 = vsub.f32 %v217, %v235
    %v239 = vsub.f32 %v218, %v235
    %v240 = vmul.f32 %v236, %v236
    %v241 = vmul.f32 %v237, %v237
    %v242 = vmul.f32 %v238, %v238
    %v243 = vmul.f32 %v239, %v239
    %v244 = vadd.f32 %v240, %v241
    %245 = vadd.xlane.f32.xlu0 %v244
    %v246 = vpop.xlane.xlu0 %245
    %v247 = vadd.f32 %v242, %v243
    %248 = vadd.xlane.f32.xlu0 %v247
    %v249 = vpop.xlane.xlu0 %248
    %v250 = vmul.f32 %v246, %v233
    %v251 = vmul.f32 %v249, %v233
    %v252 = vadd.f32 %v250, 1e-05
    %v253 = vadd.f32 %v251, 1e-05
    %v254 = vrsqrt.pop %v252
    %v255 = vmul.f32 %v254, %v252
    %v256 = vmul.f32 %v255, %v254
    %v257 = vmul.f32 0.5, %v256
    %v258 = vsub.f32 1.5, %v257
    %v259 = vmul.f32 %v254, %v258
    %vm260 = vweird.f32 %v252
    %vm261 = vweird.f32 %v254
    %vm262 = vmor %vm260, %vm261
    %v263 = vsel %vm262, %v254, %v259
    %v264 = vrsqrt.pop %v253
    %v265 = vmul.f32 %v264, %v253
    %v266 = vmul.f32 %v265, %v264
    %v267 = vmul.f32 0.5, %v266
    %v268 = vsub.f32 1.5, %v267
    %v269 = vmul.f32 %v264, %v268
    %vm270 = vweird.f32 %v253
    %vm271 = vweird.f32 %v264
    %vm272 = vmor %vm270, %vm271
    %v273 = vsel %vm272, %v264, %v269
    %v274 = vmul.f32 %v236, %v263
    %v275 = vmul.f32 %v237, %v263
    %v276 = vmul.f32 %v238, %v273
    %v277 = vmul.f32 %v239, %v273
    %v279 = vperm.slane %v219, 0
    %v280 = vperm.slane %v219, 1
    %v283 = vmul.f32 %v274, %v279
    %v284 = vmul.f32 %v275, %v280
    %v285 = vmul.f32 %v276, %v279
    %v286 = vmul.f32 %v277, %v280
    %v288 = vperm.slane %v220, 0
    %v289 = vperm.slane %v220, 1
    %v292 = vadd.f32 %v283, %v288
    %v293 = vadd.f32 %v284, %v289
    %v294 = vadd.f32 %v285, %v288
    %v295 = vadd.f32 %v286, %v289
    %v296 = vpack.c.bf16 %v294, %v292
    %v297 = vpack.c.bf16 %v295, %v293
    %v298 = vld [vmem:[#allocation10] sm:$0xf]
    %v299 = vld [vmem:[#allocation10 + $0x4] sm:$0xf]
    %v300 = vld [vmem:[#allocation10 + $0x8] sm:$0xf]
    %v301 = vld [vmem:[#allocation10 + $0xc] sm:$0xf]
    %v302 = vld [vmem:[#allocation10 + $0x10] sm:$0xf]
    %v303 = vld [vmem:[#allocation10 + $0x14] sm:$0xf]
    %v304 = vld [vmem:[#allocation10 + $0x18] sm:$0xf]
    %v305 = vld [vmem:[#allocation10 + $0x1c] sm:$0xf]
    %v306 = vld [vmem:[#allocation10 + $0x20] sm:$0xf]
    %v307 = vld [vmem:[#allocation10 + $0x24] sm:$0xf]
    %v308 = vld [vmem:[#allocation10 + $0x28] sm:$0xf]
    %v309 = vld [vmem:[#allocation10 + $0x2c] sm:$0xf]
    %v310 = vld [vmem:[#allocation10 + $0x30] sm:$0xf]
    %v311 = vld [vmem:[#allocation10 + $0x34] sm:$0xf]
    %v312 = vld [vmem:[#allocation10 + $0x38] sm:$0xf]
    %v313 = vld [vmem:[#allocation10 + $0x3c] sm:$0xf]
    %v314 = vld [vmem:[#allocation10 + $0x40] sm:$0xf]
    %v315 = vld [vmem:[#allocation10 + $0x44] sm:$0xf]
    %v316 = vld [vmem:[#allocation10 + $0x48] sm:$0xf]
    %v317 = vld [vmem:[#allocation10 + $0x4c] sm:$0xf]
    %v318 = vld [vmem:[#allocation10 + $0x50] sm:$0xf]
    %v319 = vld [vmem:[#allocation10 + $0x54] sm:$0xf]
    %v320 = vld [vmem:[#allocation10 + $0x58] sm:$0xf]
    %v321 = vld [vmem:[#allocation10 + $0x5c] sm:$0xf]
    %v322 = vld [vmem:[#allocation10 + $0x60] sm:$0xf]
    %v323 = vld [vmem:[#allocation10 + $0x64] sm:$0xf]
    %v324 = vld [vmem:[#allocation10 + $0x68] sm:$0xf]
    %v325 = vld [vmem:[#allocation10 + $0x6c] sm:$0xf]
    %v326 = vld [vmem:[#allocation10 + $0x70] sm:$0xf]
    %v327 = vld [vmem:[#allocation10 + $0x74] sm:$0xf]
    %v328 = vld [vmem:[#allocation10 + $0x78] sm:$0xf]
    %v329 = vld [vmem:[#allocation10 + $0x7c] sm:$0xf]
    %v330 = vld [vmem:[#allocation11] sm:$0x1]
    %v332 = vperm.slane %v330, 0
    %v366 = vunpack.c.l.b16 %v298
    %v367 = vunpack.c.l.b16 %v299
    %v368 = vunpack.c.l.b16 %v300
    %v369 = vunpack.c.l.b16 %v301
    %v370 = vunpack.c.l.b16 %v302
    %v371 = vunpack.c.l.b16 %v303
    %v372 = vunpack.c.l.b16 %v304
    %v373 = vunpack.c.l.b16 %v305
    %v374 = vunpack.c.l.b16 %v306
    %v375 = vunpack.c.l.b16 %v307
    %v376 = vunpack.c.l.b16 %v308
    %v377 = vunpack.c.l.b16 %v309
    %v378 = vunpack.c.l.b16 %v310
    %v379 = vunpack.c.l.b16 %v311
    %v380 = vunpack.c.l.b16 %v312
    %v381 = vunpack.c.l.b16 %v313
    %v382 = vunpack.c.l.b16 %v314
    %v383 = vunpack.c.l.b16 %v315
    %v384 = vunpack.c.l.b16 %v316
    %v385 = vunpack.c.l.b16 %v317
    %v386 = vunpack.c.l.b16 %v318
    %v387 = vunpack.c.l.b16 %v319
    %v388 = vunpack.c.l.b16 %v320
    %v389 = vunpack.c.l.b16 %v321
    %v390 = vunpack.c.l.b16 %v322
    %v391 = vunpack.c.l.b16 %v323
    %v392 = vunpack.c.l.b16 %v324
    %v393 = vunpack.c.l.b16 %v325
    %v394 = vunpack.c.l.b16 %v326
    %v395 = vunpack.c.l.b16 %v327
    %v396 = vunpack.c.l.b16 %v328
    %v397 = vunpack.c.l.b16 %v329
    %v398 = vpack.c.b16 %v367, %v366
    %v399 = vpack.c.b16 %v369, %v368
    %v400 = vpack.c.b16 %v371, %v370
    %v401 = vpack.c.b16 %v373, %v372
    %v402 = vpack.c.b16 %v375, %v374
    %v403 = vpack.c.b16 %v377, %v376
    %v404 = vpack.c.b16 %v379, %v378
    %v405 = vpack.c.b16 %v381, %v380
    %v406 = vpack.c.b16 %v383, %v382
    %v407 = vpack.c.b16 %v385, %v384
    %v408 = vpack.c.b16 %v387, %v386
    %v409 = vpack.c.b16 %v389, %v388
    %v410 = vpack.c.b16 %v391, %v390
    %v411 = vpack.c.b16 %v393, %v392
    %v412 = vpack.c.b16 %v395, %v394
    %v413 = vpack.c.b16 %v397, %v396
    %430 = vmatpush.bf16.msra.mxu0 %v405
    %431 = vmatpush.bf16.msra.mxu0 %v404
    %432 = vmatpush.bf16.msra.mxu0 %v403
    %433 = vmatpush.bf16.msra.mxu0 %v402
    %434 = vmatpush.bf16.msra.mxu0 %v401
    %435 = vmatpush.bf16.msra.mxu0 %v400
    %436 = vmatpush.bf16.msra.mxu0 %v399
    %437 = vmatpush.bf16.msra.mxu0 %v398
    %438 = vmatmul.bf16.gmra.mxu0 %v296
    %v439 = vpop.f32.mrf.mxu0
    %v440 = vadd.f32 %v332, %v439
    %v441 = vpop.f32.mrf.mxu0
    %v442 = vadd.f32 %v332, %v441
    %443 = vdwg.mxu0
    %444 = vmatpush.bf16.msra.mxu0 %v413
    %445 = vmatpush.bf16.msra.mxu0 %v412
    %446 = vmatpush.bf16.msra.mxu0 %v411
    %447 = vmatpush.bf16.msra.mxu0 %v410
    %448 = vmatpush.bf16.msra.mxu0 %v409
    %449 = vmatpush.bf16.msra.mxu0 %v408
    %450 = vmatpush.bf16.msra.mxu0 %v407
    %451 = vmatpush.bf16.msra.mxu0 %v406
    %452 = vmatmul.bf16.gmra.mxu0 %v297
    %v453 = vpop.f32.mrf.mxu0
    %v454 = vadd.f32 %v440, %v453
    %v455 = vpop.f32.mrf.mxu0
    %v456 = vadd.f32 %v442, %v455
    %457 = vdwg.mxu0
    %v458 = vmax.f32 %v454, 0.0
    %v459 = vmax.f32 %v456, 0.0
    %v460 = vld [vmem:[%s7] sm:$0x1]
    %v461 = vld [vmem:[%s8] sm:$0x1]
    %462 = vadd.xlane.f32.xlu0 %v458
    %v463 = vpop.xlane.xlu0 %462
    %464 = vadd.xlane.f32.xlu0 %v459
    %v465 = vpop.xlane.xlu0 %464
    %v466 = vrcp.pop 128.0
    %v467 = vmul.f32 128.0, %v466
    %v468 = vsub.f32 1.0, %v467
    %v469 = vmul.f32 %v466, %v468
    %v470 = vadd.f32 %v466, %v469
    %vm471 = vweird.f32 %v466
    %v472 = vsel %vm471, %v466, %v470
    %v473 = vmul.f32 %v463, %v472
    %v474 = vmul.f32 %v465, %v472
    %v475 = vsub.f32 %v458, %v473
    %v476 = vsub.f32 %v459, %v474
    %v477 = vmul.f32 %v475, %v475
    %v478 = vmul.f32 %v476, %v476
    %479 = vadd.xlane.f32.xlu0 %v477
    %v480 = vpop.xlane.xlu0 %479
    %481 = vadd.xlane.f32.xlu0 %v478
    %v482 = vpop.xlane.xlu0 %481
    %v483 = vmul.f32 %v480, %v472
    %v484 = vmul.f32 %v482, %v472
    %v485 = vadd.f32 %v483, 1e-05
    %v486 = vadd.f32 %v484, 1e-05
    %v487 = vrsqrt.pop %v485
    %v488 = vmul.f32 %v487, %v485
    %v489 = vmul.f32 %v488, %v487
    %v490 = vmul.f32 0.5, %v489
    %v491 = vsub.f32 1.5, %v490
    %v492 = vmul.f32 %v487, %v491
    %vm493 = vweird.f32 %v485
    %vm494 = vweird.f32 %v487
    %vm495 = vmor %vm493, %vm494
    %v496 = vsel %vm495, %v487, %v492
    %v497 = vrsqrt.pop %v486
    %v498 = vmul.f32 %v497, %v486
    %v499 = vmul.f32 %v498, %v497
    %v500 = vmul.f32 0.5, %v499
    %v501 = vsub.f32 1.5, %v500
    %v502 = vmul.f32 %v497, %v501
    %vm503 = vweird.f32 %v486
    %vm504 = vweird.f32 %v497
    %vm505 = vmor %vm503, %vm504
    %v506 = vsel %vm505, %v497, %v502
    %v507 = vmul.f32 %v475, %v496
    %v508 = vmul.f32 %v476, %v506
    %v510 = vperm.slane %v460, 0
    %v512 = vmul.f32 %v507, %v510
    %v513 = vmul.f32 %v508, %v510
    %v515 = vperm.slane %v461, 0
    %v517 = vadd.f32 %v512, %v515
    %v518 = vadd.f32 %v513, %v515
    %v519 = vpack.c.bf16 %v518, %v517
    %v520 = vld [vmem:[#allocation13] sm:$0xff]
    %v521 = vld [vmem:[#allocation13 + $0x8] sm:$0xf]
    %v522 = vld [vmem:[#allocation13 + $0xc] sm:$0xff]
    %v523 = vld [vmem:[#allocation13 + $0x14] sm:$0xf]
    %v524 = vld [vmem:[#allocation13 + $0x18] sm:$0xff]
    %v525 = vld [vmem:[#allocation13 + $0x20] sm:$0xf]
    %v526 = vld [vmem:[#allocation13 + $0x24] sm:$0xff]
    %v527 = vld [vmem:[#allocation13 + $0x2c] sm:$0xf]
    %v528 = vld [vmem:[#allocation13 + $0x30] sm:$0xff]
    %v529 = vld [vmem:[#allocation13 + $0x38] sm:$0xf]
    %v530 = vld [vmem:[#allocation13 + $0x3c] sm:$0xff]
    %v531 = vld [vmem:[#allocation13 + $0x44] sm:$0xf]
    %v532 = vld [vmem:[#allocation13 + $0x48] sm:$0xff]
    %v533 = vld [vmem:[#allocation13 + $0x50] sm:$0xf]
    %v534 = vld [vmem:[#allocation13 + $0x54] sm:$0xff]
    %v535 = vld [vmem:[#allocation13 + $0x5c] sm:$0xf]
    %v536 = vld [vmem:[#allocation13 + $0x60] sm:$0xff]
    %v537 = vld [vmem:[#allocation13 + $0x68] sm:$0xf]
    %v538 = vld [vmem:[#allocation13 + $0x6c] sm:$0xff]
    %v539 = vld [vmem:[#allocation13 + $0x74] sm:$0xf]
    %v540 = vld [vmem:[#allocation13 + $0x78] sm:$0xff]
    %v541 = vld [vmem:[#allocation13 + $0x80] sm:$0xf]
    %v542 = vld [vmem:[#allocation13 + $0x84] sm:$0xff]
    %v543 = vld [vmem:[#allocation13 + $0x8c] sm:$0xf]
    %v544 = vld [vmem:[#allocation13 + $0x90] sm:$0xff]
    %v545 = vld [vmem:[#allocation13 + $0x98] sm:$0xf]
    %v546 = vld [vmem:[#allocation13 + $0x9c] sm:$0xff]
    %v547 = vld [vmem:[#allocation13 + $0xa4] sm:$0xf]
    %v548 = vld [vmem:[#allocation13 + $0xa8] sm:$0xff]
    %v549 = vld [vmem:[#allocation13 + $0xb0] sm:$0xf]
    %v550 = vld [vmem:[#allocation13 + $0xb4] sm:$0xff]
    %v551 = vld [vmem:[#allocation13 + $0xbc] sm:$0xf]
    %v552 = vld [vmem:[%s10] sm:$0x7]
    %v554 = vperm.slane %v552, 0
    %v555 = vperm.slane %v552, 1
    %v556 = vperm.slane %v552, 2
    %v592 = vunpack.c.l.b16 %v520
    %v593 = vunpack.c.h.b16 %v520
    %v594 = vunpack.c.l.b16 %v521
    %v595 = vunpack.c.l.b16 %v522
    %v596 = vunpack.c.h.b16 %v522
    %v597 = vunpack.c.l.b16 %v523
    %v598 = vunpack.c.l.b16 %v524
    %v599 = vunpack.c.h.b16 %v524
    %v600 = vunpack.c.l.b16 %v525
    %v601 = vunpack.c.l.b16 %v526
    %v602 = vunpack.c.h.b16 %v526
    %v603 = vunpack.c.l.b16 %v527
    %v604 = vunpack.c.l.b16 %v528
    %v605 = vunpack.c.h.b16 %v528
    %v606 = vunpack.c.l.b16 %v529
    %v607 = vunpack.c.l.b16 %v530
    %v608 = vunpack.c.h.b16 %v530
    %v609 = vunpack.c.l.b16 %v531
    %v610 = vunpack.c.l.b16 %v532
    %v611 = vunpack.c.h.b16 %v532
    %v612 = vunpack.c.l.b16 %v533
    %v613 = vunpack.c.l.b16 %v534
    %v614 = vunpack.c.h.b16 %v534
    %v615 = vunpack.c.l.b16 %v535
    %v616 = vunpack.c.l.b16 %v536
    %v617 = vunpack.c.h.b16 %v536
    %v618 = vunpack.c.l.b16 %v537
    %v619 = vunpack.c.l.b16 %v538
    %v620 = vunpack.c.h.b16 %v538
    %v621 = vunpack.c.l.b16 %v539
    %v622 = vunpack.c.l.b16 %v540
    %v623 = vunpack.c.h.b16 %v540
    %v624 = vunpack.c.l.b16 %v541
    %v625 = vunpack.c.l.b16 %v542
    %v626 = vunpack.c.h.b16 %v542
    %v627 = vunpack.c.l.b16 %v543
    %v628 = vunpack.c.l.b16 %v544
    %v629 = vunpack.c.h.b16 %v544
    %v630 = vunpack.c.l.b16 %v545
    %v631 = vunpack.c.l.b16 %v546
    %v632 = vunpack.c.h.b16 %v546
    %v633 = vunpack.c.l.b16 %v547
    %v634 = vunpack.c.l.b16 %v548
    %v635 = vunpack.c.h.b16 %v548
    %v636 = vunpack.c.l.b16 %v549
    %v637 = vunpack.c.l.b16 %v550
    %v638 = vunpack.c.h.b16 %v550
    %v639 = vunpack.c.l.b16 %v551
    %v640 = vpack.c.b16 %v595, %v592
    %v641 = vpack.c.b16 %v596, %v593
    %v642 = vpack.c.b16 %v597, %v594
    %v643 = vpack.c.b16 %v601, %v598
    %v644 = vpack.c.b16 %v602, %v599
    %v645 = vpack.c.b16 %v603, %v600
    %v646 = vpack.c.b16 %v607, %v604
    %v647 = vpack.c.b16 %v608, %v605
    %v648 = vpack.c.b16 %v609, %v606
    %v649 = vpack.c.b16 %v613, %v610
    %v650 = vpack.c.b16 %v614, %v611
    %v651 = vpack.c.b16 %v615, %v612
    %v652 = vpack.c.b16 %v619, %v616
    %v653 = vpack.c.b16 %v620, %v617
    %v654 = vpack.c.b16 %v621, %v618
    %v655 = vpack.c.b16 %v625, %v622
    %v656 = vpack.c.b16 %v626, %v623
    %v657 = vpack.c.b16 %v627, %v624
    %v658 = vpack.c.b16 %v631, %v628
    %v659 = vpack.c.b16 %v632, %v629
    %v660 = vpack.c.b16 %v633, %v630
    %v661 = vpack.c.b16 %v637, %v634
    %v662 = vpack.c.b16 %v638, %v635
    %v663 = vpack.c.b16 %v639, %v636
    %688 = vmatpush.bf16.msra.mxu0 %v661
    %689 = vmatpush.bf16.msra.mxu0 %v658
    %690 = vmatpush.bf16.msra.mxu0 %v655
    %691 = vmatpush.bf16.msra.mxu0 %v652
    %692 = vmatpush.bf16.msra.mxu0 %v649
    %693 = vmatpush.bf16.msra.mxu0 %v646
    %694 = vmatpush.bf16.msra.mxu0 %v643
    %695 = vmatpush.bf16.msra.mxu0 %v640
    %696 = vmatmul.bf16.gmra.mxu0 %v519
    %v697 = vpop.f32.mrf.mxu0
    %v698 = vadd.f32 %v554, %v697
    %v699 = vpop.f32.mrf.mxu0
    %v700 = vadd.f32 %v554, %v699
    %701 = vdwg.mxu0
    %702 = vmatpush.bf16.msra.mxu0 %v662
    %703 = vmatpush.bf16.msra.mxu0 %v659
    %704 = vmatpush.bf16.msra.mxu0 %v656
    %705 = vmatpush.bf16.msra.mxu0 %v653
    %706 = vmatpush.bf16.msra.mxu0 %v650
    %707 = vmatpush.bf16.msra.mxu0 %v647
    %708 = vmatpush.bf16.msra.mxu0 %v644
    %709 = vmatpush.bf16.msra.mxu0 %v641
    %710 = vmatmul.bf16.gmra.mxu0 %v519
    %v711 = vpop.f32.mrf.mxu0
    %v712 = vadd.f32 %v555, %v711
    %v713 = vpop.f32.mrf.mxu0
    %v714 = vadd.f32 %v555, %v713
    %715 = vdwg.mxu0
    %716 = vmatpush.bf16.msra.mxu0 %v663
    %717 = vmatpush.bf16.msra.mxu0 %v660
    %718 = vmatpush.bf16.msra.mxu0 %v657
    %719 = vmatpush.bf16.msra.mxu0 %v654
    %720 = vmatpush.bf16.msra.mxu0 %v651
    %721 = vmatpush.bf16.msra.mxu0 %v648
    %722 = vmatpush.bf16.msra.mxu0 %v645
    %723 = vmatpush.bf16.msra.mxu0 %v642
    %724 = vmatmul.bf16.gmra.mxu0 %v519
    %v725 = vpop.f32.mrf.mxu0
    %v726 = vadd.f32 %v556, %v725
    %v727 = vpop.f32.mrf.mxu0
    %v728 = vadd.f32 %v556, %v727
    %729 = vdwg.mxu0
    %v730 = vmax.f32 %v698, %v712
    %v731 = vmax.f32 %v700, %v714
    %v732 = vmax.f32 %v730, %v726
    %v733 = vmax.f32 %v731, %v728
    %v734 = vsub.f32 %v698, %v732
    %v735 = vsub.f32 %v700, %v733
    %v736 = vmul.f32 %v734, 1.442695
    %v737 = vpow.pop %v736
    %v738 = vmul.f32 %v735, 1.442695
    %v739 = vpow.pop %v738
    %v740 = vsub.f32 %v712, %v732
    %v741 = vsub.f32 %v714, %v733
    %v742 = vmul.f32 %v740, 1.442695
    %v743 = vpow.pop %v742
    %v744 = vmul.f32 %v741, 1.442695
    %v745 = vpow.pop %v744
    %v746 = vsub.f32 %v726, %v732
    %v747 = vsub.f32 %v728, %v733
    %v748 = vmul.f32 %v746, 1.442695
    %v749 = vpow.pop %v748
    %v750 = vmul.f32 %v747, 1.442695
    %v751 = vpow.pop %v750
    %v752 = vadd.f32 %v737, %v743
    %v753 = vadd.f32 %v739, %v745
    %v754 = vadd.f32 %v752, %v749
    %v755 = vadd.f32 %v753, %v751
    %v756 = vrcp.pop %v754
    %v757 = vmul.f32 %v754, %v756
    %v758 = vsub.f32 1.0, %v757
    %v759 = vmul.f32 %v756, %v758
    %v760 = vadd.f32 %v756, %v759
    %vm761 = vweird.f32 %v754
    %vm762 = vweird.f32 %v756
    %vm763 = vmor %vm761, %vm762
    %v764 = vsel %vm763, %v756, %v760
    %v765 = vand.u32 2147483647, %v754
    %vm766 = vcmp.eq.f32.partialorder %v765, 8.507059e+37
    %v767 = vand.u32 %v754, 2147483648
    %v768 = vor.u32 1.1754944e-38, %v767
    %v769 = vsel %vm766, %v768, %v764
    %v770 = vmul.f32 1.0, %v769
    %v771 = vrcp.pop %v755
    %v772 = vmul.f32 %v755, %v771
    %v773 = vsub.f32 1.0, %v772
    %v774 = vmul.f32 %v771, %v773
    %v775 = vadd.f32 %v771, %v774
    %vm776 = vweird.f32 %v755
    %vm777 = vweird.f32 %v771
    %vm778 = vmor %vm776, %vm777
    %v779 = vsel %vm778, %v771, %v775
    %v780 = vand.u32 2147483647, %v755
    %vm781 = vcmp.eq.f32.partialorder %v780, 8.507059e+37
    %v782 = vand.u32 %v755, 2147483648
    %v783 = vor.u32 1.1754944e-38, %v782
    %v784 = vsel %vm781, %v783, %v779
    %v785 = vmul.f32 1.0, %v784
    %v786 = vmul.f32 %v737, %v770
    %v787 = vmul.f32 %v739, %v785
    %v788 = vmul.f32 %v743, %v770
    %v789 = vmul.f32 %v745, %v785
    %v790 = vmul.f32 %v749, %v770
    %v791 = vmul.f32 %v751, %v785
    %v792 = vld [vmem:[#allocation14] sm:$0xff]
    %v793 = vld [vmem:[#allocation14 + $0x8] sm:$0xff]
    %v794 = vld [vmem:[#allocation14 + $0x10] sm:$0xff]
    %v795 = vld [vmem:[#allocation14 + $0x18] sm:$0xff]
    %v796 = vld [vmem:[#allocation14 + $0x20] sm:$0xff]
    %v797 = vld [vmem:[#allocation14 + $0x28] sm:$0xff]
    %v798 = vld [vmem:[#allocation14 + $0x30] sm:$0xff]
    %v799 = vld [vmem:[#allocation14 + $0x38] sm:$0xff]
    %v800 = vld [vmem:[#allocation14 + $0x40] sm:$0xff]
    %v801 = vld [vmem:[#allocation14 + $0x48] sm:$0xff]
    %v802 = vld [vmem:[#allocation14 + $0x50] sm:$0xff]
    %v803 = vld [vmem:[#allocation14 + $0x58] sm:$0xff]
    %v804 = vld [vmem:[#allocation14 + $0x60] sm:$0xff]
    %v805 = vld [vmem:[#allocation14 + $0x68] sm:$0xff]
    %v806 = vld [vmem:[#allocation14 + $0x70] sm:$0xff]
    %v807 = vld [vmem:[#allocation14 + $0x78] sm:$0xff]
    %v808 = vld [vmem:[#allocation14 + $0x80] sm:$0xff]
    %v809 = vld [vmem:[#allocation14 + $0x88] sm:$0xff]
    %v810 = vld [vmem:[#allocation14 + $0x90] sm:$0xff]
    %v811 = vld [vmem:[#allocation14 + $0x98] sm:$0xff]
    %v812 = vld [vmem:[#allocation14 + $0xa0] sm:$0xff]
    %v813 = vld [vmem:[#allocation14 + $0xa8] sm:$0xff]
    %v814 = vld [vmem:[#allocation14 + $0xb0] sm:$0xff]
    %v815 = vld [vmem:[#allocation14 + $0xb8] sm:$0xff]
    %v816 = vld [vmem:[#allocation14 + $0xc0] sm:$0xff]
    %v817 = vld [vmem:[#allocation14 + $0xc8] sm:$0xff]
    %v818 = vld [vmem:[#allocation14 + $0xd0] sm:$0xff]
    %v819 = vld [vmem:[#allocation14 + $0xd8] sm:$0xff]
    %v820 = vld [vmem:[#allocation14 + $0xe0] sm:$0xff]
    %v821 = vld [vmem:[#allocation14 + $0xe8] sm:$0xff]
    %v822 = vld [vmem:[#allocation14 + $0xf0] sm:$0xff]
    %v823 = vld [vmem:[#allocation14 + $0xf8] sm:$0xff]
    %v824 = vld [vmem:[#allocation14 + $0x100] sm:$0xff]
    %v825 = vld [vmem:[#allocation14 + $0x108] sm:$0xff]
    %v826 = vld [vmem:[#allocation14 + $0x110] sm:$0xff]
    %v827 = vld [vmem:[#allocation14 + $0x118] sm:$0xff]
    %v828 = vld [vmem:[#allocation14 + $0x120] sm:$0xff]
    %v829 = vld [vmem:[#allocation14 + $0x128] sm:$0xff]
    %v830 = vld [vmem:[#allocation14 + $0x130] sm:$0xff]
    %v831 = vld [vmem:[#allocation14 + $0x138] sm:$0xff]
    %v832 = vld [vmem:[#allocation14 + $0x140] sm:$0xff]
    %v833 = vld [vmem:[#allocation14 + $0x148] sm:$0xff]
    %v834 = vld [vmem:[#allocation14 + $0x150] sm:$0xff]
    %v835 = vld [vmem:[#allocation14 + $0x158] sm:$0xff]
    %v836 = vld [vmem:[#allocation14 + $0x160] sm:$0xff]
    %v837 = vld [vmem:[#allocation14 + $0x168] sm:$0xff]
    %v838 = vld [vmem:[#allocation14 + $0x170] sm:$0xff]
    %v839 = vld [vmem:[#allocation14 + $0x178] sm:$0xff]
    %840 = vmatpush.msra.mxu0 %v823
    %841 = vmatpush.msra.mxu0 %v822
    %842 = vmatpush.msra.mxu0 %v821
    %843 = vmatpush.msra.mxu0 %v820
    %844 = vmatpush.msra.mxu0 %v819
    %845 = vmatpush.msra.mxu0 %v818
    %846 = vmatpush.msra.mxu0 %v817
    %847 = vmatpush.msra.mxu0 %v816
    %848 = vmatpush.msra.mxu0 %v815
    %849 = vmatpush.msra.mxu0 %v814
    %850 = vmatpush.msra.mxu0 %v813
    %851 = vmatpush.msra.mxu0 %v812
    %852 = vmatpush.msra.mxu0 %v811
    %853 = vmatpush.msra.mxu0 %v810
    %854 = vmatpush.msra.mxu0 %v809
    %855 = vmatpush.msra.mxu0 %v808
    %856 = vmatmul.f32.gmra.mxu0 %v788
    %v857 = vpop.f32.mrf.mxu0
    %v858 = vadd.f32 0.0, %v857
    %859 = vmatmul.f32.gmra.mxu0 %v789
    %v860 = vpop.f32.mrf.mxu0
    %v861 = vadd.f32 0.0, %v860
    %862 = vdwg.mxu0
    %863 = vmatpush.msra.mxu0 %v807
    %864 = vmatpush.msra.mxu0 %v806
    %865 = vmatpush.msra.mxu0 %v805
    %866 = vmatpush.msra.mxu0 %v804
    %867 = vmatpush.msra.mxu0 %v803
    %868 = vmatpush.msra.mxu0 %v802
    %869 = vmatpush.msra.mxu0 %v801
    %870 = vmatpush.msra.mxu0 %v800
    %871 = vmatpush.msra.mxu0 %v799
    %872 = vmatpush.msra.mxu0 %v798
    %873 = vmatpush.msra.mxu0 %v797
    %874 = vmatpush.msra.mxu0 %v796
    %875 = vmatpush.msra.mxu0 %v795
    %876 = vmatpush.msra.mxu0 %v794
    %877 = vmatpush.msra.mxu0 %v793
    %878 = vmatpush.msra.mxu0 %v792
    %879 = vmatmul.f32.gmra.mxu0 %v786
    %v880 = vpop.f32.mrf.mxu0
    %v881 = vadd.f32 %v858, %v880
    %882 = vmatmul.f32.gmra.mxu0 %v787
    %v883 = vpop.f32.mrf.mxu0
    %v884 = vadd.f32 %v861, %v883
    %885 = vdwg.mxu0
    %886 = vmatpush.msra.mxu0 %v839
    %887 = vmatpush.msra.mxu0 %v838
    %888 = vmatpush.msra.mxu0 %v837
    %889 = vmatpush.msra.mxu0 %v836
    %890 = vmatpush.msra.mxu0 %v835
    %891 = vmatpush.msra.mxu0 %v834
    %892 = vmatpush.msra.mxu0 %v833
    %893 = vmatpush.msra.mxu0 %v832
    %894 = vmatpush.msra.mxu0 %v831
    %895 = vmatpush.msra.mxu0 %v830
    %896 = vmatpush.msra.mxu0 %v829
    %897 = vmatpush.msra.mxu0 %v828
    %898 = vmatpush.msra.mxu0 %v827
    %899 = vmatpush.msra.mxu0 %v826
    %900 = vmatpush.msra.mxu0 %v825
    %901 = vmatpush.msra.mxu0 %v824
    %902 = vmatmul.f32.gmra.mxu0 %v790
    %v903 = vpop.f32.mrf.mxu0
    %v904 = vadd.f32 0.0, %v903
    %905 = vmatmul.f32.gmra.mxu0 %v791
    %v906 = vpop.f32.mrf.mxu0
    %v907 = vadd.f32 0.0, %v906
    %908 = vdwg.mxu0
    %v909 = vadd.f32 %v881, %v904
    %v910 = vadd.f32 %v884, %v907
    %911 = vst [vmem:[#allocation16] sm:$0xff] %v909
    %912 = vst [vmem:[#allocation16 + $0x8] sm:$0xff] %v910
    // Predicated region
    $region82: #{tpu_custom_call.1} parent=1 // pred_check
      _
    $region83: #{tpu_custom_call.1} parent=1 // pred_check_branch
      %914 = sbr.rel (0) target = $region85
    $region84: #{tpu_custom_call.1} parent=1 // pred_region
      %916 = vsyncadd [#allocation4], 0
      %s917 = sshll.u32 [#allocation16], 4
      %s918 = int_to_ptr.vmem [resolvable:$true] %s917
      %s919 = sshll.u32 %s12, 4
      %s920 = int_to_ptr.hbm [resolvable:$true] %s919
      %925 = dma.vmem_to_hbm [thread:$0]  %s918, 256, %s920, [#allocation4], 128, 128, 8
    $region85: #{tpu_custom_call.1} parent=1 // pred_fallthru
      _
    // Predicated region
    $region86: #{tpu_custom_call.1} parent=1 // pred_check
      _
    $region87: #{tpu_custom_call.1} parent=1 // pred_check_branch
      %927 = sbr.rel (0) target = $region89
    $region88: #{tpu_custom_call.1} parent=1 // pred_region
      %929 = dma.done [#allocation4], 256
    $region89: #{tpu_custom_call.1} parent=1 // pred_fallthru
      _
    %930 = vsyncpa [#allocation3], 1
    %931 = vsyncpa [#allocation6], 1
    %932 = vsyncpa [#allocation9], 1
    %933 = vsyncpa [#allocation12], 1
    %934 = vsyncpa [#allocation15], 1
    %935 = vsyncpa [#allocation4], 1

</llo_original>
